<compile_context>
chip_gen: v7x
topology: tpu7x:2x2x1
jax: 0.10.0
libtpu: 0.0.40
codegen_flags: <defaults>
</compile_context>

<pallas_src>
from functools import partial

import jax
import jax.numpy as jnp
from jax.experimental import pallas as pl
from jax.experimental.pallas import tpu as pltpu


def _make_kernel(C, H, W, O, KH, KW, Nb, K_pad):
    HW = H * W
    K = C * KH * KW                     # im2col contraction size (27)

    def kernel(x_ref, w_ref, b_ref, o_ref, p_ref):
        # x_ref: [Nb, C, HW]     f32   flattened spatial, lane-dense
        # w_ref: [O, K_pad]      bf16  row order (kh, kw, c), zero-padded columns
        # b_ref: [O, 1]          f32
        # o_ref: [Nb, O, HW]     f32   uncropped, lane-dense (crop happens in wrapper)
        # p_ref: [K_pad, Nb*HW]  f32   VMEM scratch: im2col patch matrix

        # Zero only the K..K_pad pad rows so uninitialized VMEM can never inject
        # NaN/Inf through the (zero) padded weight columns.
        if K_pad > K:
            p_ref[K:K_pad, :] = jnp.zeros((K_pad - K, Nb * HW), p_ref.dtype)

        # Patch build: 9 whole-tile lane rolls per image (XLU), each stored as a
        # [C, HW] slab.  roll by HW - s  == left shift by s; wrapped data lands
        # only in columns >= HW - max_shift, which are cropped in the wrapper.
        for n in range(Nb):
            img = x_ref[n]                                            # [C, HW]
            for kh in range(KH):
                for kw in range(KW):
                    s = kh * W + kw
                    r = kh * KW + kw
                    tile = img if s == 0 else pltpu.roll(img, shift=HW - s, axis=1)
                    p_ref[r * C:(r + 1) * C, n * HW:(n + 1) * HW] = tile

        # Single MXU GEMM over the full receptive field and the whole image block:
        # bf16 operands, f32 accumulation.  Result [O, Nb*HW] is fully lane-dense.
        p = p_ref[...].astype(jnp.bfloat16)                           # [K_pad, Nb*HW]
        res = jnp.dot(w_ref[...], p, preferred_element_type=jnp.float32)
        res = (res + b_ref[...]).astype(o_ref.dtype)                  # f32 bias add

        # 256-lane-aligned, full-vreg, unmasked stores (no in-kernel crop).
        for n in range(Nb):
            o_ref[n] = res[:, n * HW:(n + 1) * HW]

    return kernel


@partial(jax.jit, static_argnames=("nb",))
def _conv_forward(x_nchw, weight_oihw, bias, nb):
    N, C, H, W = x_nchw.shape
    O, Cw, KH, KW = weight_oihw.shape
    assert Cw == C
    Ho, Wo = H - KH + 1, W - KW + 1
    HW = H * W
    K = C * KH * KW
    K_pad = ((K + 7) // 8) * 8          # 27 -> 32: clean sublane packing for the MXU

    # Roll-wraparound safety (stride-1 VALID conv): wrapped columns start at
    # HW - max_shift, which is strictly past the last valid output column.
    max_shift = (KH - 1) * W + (KW - 1)
    assert (Ho - 1) * W + (Wo - 1) < HW - max_shift

    # Layout plumbing done once in the wrapper (tiny tensors / free reshapes):
    x_flat = x_nchw.reshape(N, C, HW)                                  # free reshape
    w2 = jnp.transpose(weight_oihw, (0, 2, 3, 1)).reshape(O, K)        # (kh, kw, c) order
    w2 = jnp.pad(w2, ((0, 0), (0, K_pad - K))).astype(jnp.bfloat16)    # pad + pre-cast once
    b2 = bias.reshape(O, 1).astype(jnp.float32)

    steps = N // nb
    out_flat = pl.pallas_call(
        _make_kernel(C, H, W, O, KH, KW, nb, K_pad),
        out_shape=jax.ShapeDtypeStruct((N, O, HW), x_nchw.dtype),
        grid=(steps,),
        in_specs=[
            pl.BlockSpec((nb, C, HW), lambda i: (i, 0, 0)),
            pl.BlockSpec((O, K_pad), lambda i: (0, 0)),
            pl.BlockSpec((O, 1), lambda i: (0, 0)),
        ],
        out_specs=pl.BlockSpec((nb, O, HW), lambda i: (i, 0, 0)),
        scratch_shapes=[pltpu.VMEM((K_pad, nb * HW), jnp.float32)],
        compiler_params=pltpu.CompilerParams(
            dimension_semantics=("parallel",)),
    )(x_flat, w2, b2)

    # Uncropped [N, O, H*W] -> NCHW, then crop the valid window (cheap XLA slice).
    return out_flat.reshape(N, O, H, W)[:, :, :Ho, :Wo]


def inq_conv2d_forward(x_nchw, weight_oihw, bias, mask=None):
    """Forward of testNet / INQ_Conv2d: F.conv2d(x, weight, bias), stride 1, no pad.
    `mask` (stopGradientMask) only modifies the backward pass, so it is accepted
    but unused in the forward."""
    del mask  # TODO(synk): stopGradientMask only affects the backward pass.
    N = x_nchw.shape[0]
    # v7x has 2 TensorCores per chip: split the batch across them via the grid.
    # Single-TC chips (v5e/v6e): whole batch in one grid step -> no per-step
    # overhead and one MXU weight push over all N*H*W lanes.
    kind = jax.devices()[0].device_kind.lower()
    two_tc = "7" in kind
    nb = N // 2 if (two_tc and N > 1 and N % 2 == 0) else N
    return _conv_forward(x_nchw, weight_oihw, bias, nb)


if __name__ == "__main__":
    key = jax.random.PRNGKey(0)
    kx, kw, kb, km = jax.random.split(key, 4)

    # Shapes implied by testNet: conv1 = INQ_Conv2d(3, 32, kernel_size=3)
    N, C, H, W = 2, 3, 16, 16
    O, KH, KW = 32, 3, 3

    x = jax.random.normal(kx, (N, C, H, W), dtype=jnp.float32)
    weight = jax.random.normal(kw, (O, C, KH, KW), dtype=jnp.float32) * 0.1
    bias = jax.random.normal(kb, (O,), dtype=jnp.float32) * 0.1
    # stopGradientMask: same shape as weight; irrelevant to the forward pass.
    mask = (jax.random.uniform(km, (O, C, KH, KW)) > 0.5).astype(jnp.float32)

    out = jax.block_until_ready(inq_conv2d_forward(x, weight, bias, mask))
    Ho, Wo = H - KH + 1, W - KW + 1
    assert out.shape == (N, O, Ho, Wo), out.shape

    def ref_conv(xr, wr):
        return jax.lax.conv_general_dilated(
            xr, wr, window_strides=(1, 1), padding="VALID",
            dimension_numbers=("NCHW", "OIHW", "NCHW"),
        ) + bias[None, :, None, None]

    # Tight check: reference with identically bf16-rounded operands (the kernel
    # multiplies bf16 operands and accumulates in f32 on the MXU).
    ref_bf16 = ref_conv(x.astype(jnp.bfloat16).astype(jnp.float32),
                        weight.astype(jnp.bfloat16).astype(jnp.float32))
    assert jnp.allclose(out, ref_bf16, atol=2e-3, rtol=2e-3), \
        float(jnp.max(jnp.abs(out - ref_bf16)))

    # Loose sanity check against the full-f32 conv (difference = bf16 operand rounding).
    ref_f32 = ref_conv(x, weight)
    assert jnp.allclose(out, ref_f32, atol=5e-2, rtol=5e-2), \
        float(jnp.max(jnp.abs(out - ref_f32)))

    print("KERNEL_OK")
</pallas_src>

<mosaic_0001>
module attributes {stable_mosaic.version = 11 : i64} {
  func.func @kernel(%arg0: i32, %arg1: memref<2x3x256xf32, #tpu.memory_space<vmem>>, %arg2: memref<32x32xbf16, #tpu.memory_space<vmem>>, %arg3: memref<32x1xf32, #tpu.memory_space<vmem>>, %arg4: memref<2x32x256xf32, #tpu.memory_space<vmem>>, %arg5: memref<32x512xf32, #tpu.memory_space<vmem>>) attributes {dimension_semantics = [#tpu.dimension_semantics<parallel>], iteration_bounds = array<i64: 1>, scalar_prefetch = 0 : i64, scratch_operands = 1 : i64, tpu.core_type = #tpu.core_type<tc>, window_params = [{transform_indices = @transform_0, window_bounds = array<i64: 2, 3, 256>}, {pipeline_mode = #tpu.pipeline_mode<synchronous>, transform_indices = @transform_1, window_bounds = array<i64: 32, 32>}, {pipeline_mode = #tpu.pipeline_mode<synchronous>, transform_indices = @transform_2, window_bounds = array<i64: 32, 1>}, {transform_indices = @transform_3, window_bounds = array<i64: 2, 32, 256>}]} {
    %cst = arith.constant 0.000000e+00 : f32
    %0 = vector.broadcast %cst : f32 to vector<5x512xf32>
    %c27 = arith.constant 27 : index
    %c0 = arith.constant 0 : index
    %1 = vector.load %arg5[%c27, %c0] : memref<32x512xf32, #tpu.memory_space<vmem>>, vector<5x512xf32>
    tpu.vector_store %arg5[%c27, %c0], %0 {strides = array<i32>} : memref<32x512xf32, #tpu.memory_space<vmem>>, vector<5x512xf32>,
    %c0_0 = arith.constant 0 : index
    %c0_1 = arith.constant 0 : index
    %c0_2 = arith.constant 0 : index
    %2 = vector.load %arg1[%c0_0, %c0_1, %c0_2] : memref<2x3x256xf32, #tpu.memory_space<vmem>>, vector<1x3x256xf32>
    %3 = vector.shape_cast %2 : vector<1x3x256xf32> to vector<3x256xf32>
    %c0_3 = arith.constant 0 : index
    %c0_4 = arith.constant 0 : index
    %4 = vector.load %arg5[%c0_3, %c0_4] : memref<32x512xf32, #tpu.memory_space<vmem>>, vector<3x256xf32>
    tpu.vector_store %arg5[%c0_3, %c0_4], %3 {strides = array<i32>} : memref<32x512xf32, #tpu.memory_space<vmem>>, vector<3x256xf32>,
    %c255_i32 = arith.constant 255 : i32
    %5 = tpu.dynamic_rotate %3 by %c255_i32 dim 1 : vector<3x256xf32>, i32 -> vector<3x256xf32>
    %c3 = arith.constant 3 : index
    %c0_5 = arith.constant 0 : index
    %6 = vector.load %arg5[%c3, %c0_5] : memref<32x512xf32, #tpu.memory_space<vmem>>, vector<3x256xf32>
    tpu.vector_store %arg5[%c3, %c0_5], %5 {strides = array<i32>} : memref<32x512xf32, #tpu.memory_space<vmem>>, vector<3x256xf32>,
    %c254_i32 = arith.constant 254 : i32
    %7 = tpu.dynamic_rotate %3 by %c254_i32 dim 1 : vector<3x256xf32>, i32 -> vector<3x256xf32>
    %c6 = arith.constant 6 : index
    %c0_6 = arith.constant 0 : index
    %8 = vector.load %arg5[%c6, %c0_6] : memref<32x512xf32, #tpu.memory_space<vmem>>, vector<3x256xf32>
    tpu.vector_store %arg5[%c6, %c0_6], %7 {strides = array<i32>} : memref<32x512xf32, #tpu.memory_space<vmem>>, vector<3x256xf32>,
    %c240_i32 = arith.constant 240 : i32
    %9 = tpu.dynamic_rotate %3 by %c240_i32 dim 1 : vector<3x256xf32>, i32 -> vector<3x256xf32>
    %c9 = arith.constant 9 : index
    %c0_7 = arith.constant 0 : index
    %10 = vector.load %arg5[%c9, %c0_7] : memref<32x512xf32, #tpu.memory_space<vmem>>, vector<3x256xf32>
    tpu.vector_store %arg5[%c9, %c0_7], %9 {strides = array<i32>} : memref<32x512xf32, #tpu.memory_space<vmem>>, vector<3x256xf32>,
    %c239_i32 = arith.constant 239 : i32
    %11 = tpu.dynamic_rotate %3 by %c239_i32 dim 1 : vector<3x256xf32>, i32 -> vector<3x256xf32>
    %c12 = arith.constant 12 : index
    %c0_8 = arith.constant 0 : index
    %12 = vector.load %arg5[%c12, %c0_8] : memref<32x512xf32, #tpu.memory_space<vmem>>, vector<3x256xf32>
    tpu.vector_store %arg5[%c12, %c0_8], %11 {strides = array<i32>} : memref<32x512xf32, #tpu.memory_space<vmem>>, vector<3x256xf32>,
    %c238_i32 = arith.constant 238 : i32
    %13 = tpu.dynamic_rotate %3 by %c238_i32 dim 1 : vector<3x256xf32>, i32 -> vector<3x256xf32>
    %c15 = arith.constant 15 : index
    %c0_9 = arith.constant 0 : index
    %14 = vector.load %arg5[%c15, %c0_9] : memref<32x512xf32, #tpu.memory_space<vmem>>, vector<3x256xf32>
    tpu.vector_store %arg5[%c15, %c0_9], %13 {strides = array<i32>} : memref<32x512xf32, #tpu.memory_space<vmem>>, vector<3x256xf32>,
    %c224_i32 = arith.constant 224 : i32
    %15 = tpu.dynamic_rotate %3 by %c224_i32 dim 1 : vector<3x256xf32>, i32 -> vector<3x256xf32>
    %c18 = arith.constant 18 : index
    %c0_10 = arith.constant 0 : index
    %16 = vector.load %arg5[%c18, %c0_10] : memref<32x512xf32, #tpu.memory_space<vmem>>, vector<3x256xf32>
    tpu.vector_store %arg5[%c18, %c0_10], %15 {strides = array<i32>} : memref<32x512xf32, #tpu.memory_space<vmem>>, vector<3x256xf32>,
    %c223_i32 = arith.constant 223 : i32
    %17 = tpu.dynamic_rotate %3 by %c223_i32 dim 1 : vector<3x256xf32>, i32 -> vector<3x256xf32>
    %c21 = arith.constant 21 : index
    %c0_11 = arith.constant 0 : index
    %18 = vector.load %arg5[%c21, %c0_11] : memref<32x512xf32, #tpu.memory_space<vmem>>, vector<3x256xf32>
    tpu.vector_store %arg5[%c21, %c0_11], %17 {strides = array<i32>} : memref<32x512xf32, #tpu.memory_space<vmem>>, vector<3x256xf32>,
    %c222_i32 = arith.constant 222 : i32
    %19 = tpu.dynamic_rotate %3 by %c222_i32 dim 1 : vector<3x256xf32>, i32 -> vector<3x256xf32>
    %c24 = arith.constant 24 : index
    %c0_12 = arith.constant 0 : index
    %20 = vector.load %arg5[%c24, %c0_12] : memref<32x512xf32, #tpu.memory_space<vmem>>, vector<3x256xf32>
    tpu.vector_store %arg5[%c24, %c0_12], %19 {strides = array<i32>} : memref<32x512xf32, #tpu.memory_space<vmem>>, vector<3x256xf32>,
    %c1 = arith.constant 1 : index
    %c0_13 = arith.constant 0 : index
    %c0_14 = arith.constant 0 : index
    %21 = vector.load %arg1[%c1, %c0_13, %c0_14] : memref<2x3x256xf32, #tpu.memory_space<vmem>>, vector<1x3x256xf32>
    %22 = vector.shape_cast %21 : vector<1x3x256xf32> to vector<3x256xf32>
    %c0_15 = arith.constant 0 : index
    %c256 = arith.constant 256 : index
    %23 = vector.load %arg5[%c0_15, %c256] : memref<32x512xf32, #tpu.memory_space<vmem>>, vector<3x256xf32>
    tpu.vector_store %arg5[%c0_15, %c256], %22 {strides = array<i32>} : memref<32x512xf32, #tpu.memory_space<vmem>>, vector<3x256xf32>,
    %c255_i32_16 = arith.constant 255 : i32
    %24 = tpu.dynamic_rotate %22 by %c255_i32_16 dim 1 : vector<3x256xf32>, i32 -> vector<3x256xf32>
    %c3_17 = arith.constant 3 : index
    %c256_18 = arith.constant 256 : index
    %25 = vector.load %arg5[%c3_17, %c256_18] : memref<32x512xf32, #tpu.memory_space<vmem>>, vector<3x256xf32>
    tpu.vector_store %arg5[%c3_17, %c256_18], %24 {strides = array<i32>} : memref<32x512xf32, #tpu.memory_space<vmem>>, vector<3x256xf32>,
    %c254_i32_19 = arith.constant 254 : i32
    %26 = tpu.dynamic_rotate %22 by %c254_i32_19 dim 1 : vector<3x256xf32>, i32 -> vector<3x256xf32>
    %c6_20 = arith.constant 6 : index
    %c256_21 = arith.constant 256 : index
    %27 = vector.load %arg5[%c6_20, %c256_21] : memref<32x512xf32, #tpu.memory_space<vmem>>, vector<3x256xf32>
    tpu.vector_store %arg5[%c6_20, %c256_21], %26 {strides = array<i32>} : memref<32x512xf32, #tpu.memory_space<vmem>>, vector<3x256xf32>,
    %c240_i32_22 = arith.constant 240 : i32
    %28 = tpu.dynamic_rotate %22 by %c240_i32_22 dim 1 : vector<3x256xf32>, i32 -> vector<3x256xf32>
    %c9_23 = arith.constant 9 : index
    %c256_24 = arith.constant 256 : index
    %29 = vector.load %arg5[%c9_23, %c256_24] : memref<32x512xf32, #tpu.memory_space<vmem>>, vector<3x256xf32>
    tpu.vector_store %arg5[%c9_23, %c256_24], %28 {strides = array<i32>} : memref<32x512xf32, #tpu.memory_space<vmem>>, vector<3x256xf32>,
    %c239_i32_25 = arith.constant 239 : i32
    %30 = tpu.dynamic_rotate %22 by %c239_i32_25 dim 1 : vector<3x256xf32>, i32 -> vector<3x256xf32>
    %c12_26 = arith.constant 12 : index
    %c256_27 = arith.constant 256 : index
    %31 = vector.load %arg5[%c12_26, %c256_27] : memref<32x512xf32, #tpu.memory_space<vmem>>, vector<3x256xf32>
    tpu.vector_store %arg5[%c12_26, %c256_27], %30 {strides = array<i32>} : memref<32x512xf32, #tpu.memory_space<vmem>>, vector<3x256xf32>,
    %c238_i32_28 = arith.constant 238 : i32
    %32 = tpu.dynamic_rotate %22 by %c238_i32_28 dim 1 : vector<3x256xf32>, i32 -> vector<3x256xf32>
    %c15_29 = arith.constant 15 : index
    %c256_30 = arith.constant 256 : index
    %33 = vector.load %arg5[%c15_29, %c256_30] : memref<32x512xf32, #tpu.memory_space<vmem>>, vector<3x256xf32>
    tpu.vector_store %arg5[%c15_29, %c256_30], %32 {strides = array<i32>} : memref<32x512xf32, #tpu.memory_space<vmem>>, vector<3x256xf32>,
    %c224_i32_31 = arith.constant 224 : i32
    %34 = tpu.dynamic_rotate %22 by %c224_i32_31 dim 1 : vector<3x256xf32>, i32 -> vector<3x256xf32>
    %c18_32 = arith.constant 18 : index
    %c256_33 = arith.constant 256 : index
    %35 = vector.load %arg5[%c18_32, %c256_33] : memref<32x512xf32, #tpu.memory_space<vmem>>, vector<3x256xf32>
    tpu.vector_store %arg5[%c18_32, %c256_33], %34 {strides = array<i32>} : memref<32x512xf32, #tpu.memory_space<vmem>>, vector<3x256xf32>,
    %c223_i32_34 = arith.constant 223 : i32
    %36 = tpu.dynamic_rotate %22 by %c223_i32_34 dim 1 : vector<3x256xf32>, i32 -> vector<3x256xf32>
    %c21_35 = arith.constant 21 : index
    %c256_36 = arith.constant 256 : index
    %37 = vector.load %arg5[%c21_35, %c256_36] : memref<32x512xf32, #tpu.memory_space<vmem>>, vector<3x256xf32>
    tpu.vector_store %arg5[%c21_35, %c256_36], %36 {strides = array<i32>} : memref<32x512xf32, #tpu.memory_space<vmem>>, vector<3x256xf32>,
    %c222_i32_37 = arith.constant 222 : i32
    %38 = tpu.dynamic_rotate %22 by %c222_i32_37 dim 1 : vector<3x256xf32>, i32 -> vector<3x256xf32>
    %c24_38 = arith.constant 24 : index
    %c256_39 = arith.constant 256 : index
    %39 = vector.load %arg5[%c24_38, %c256_39] : memref<32x512xf32, #tpu.memory_space<vmem>>, vector<3x256xf32>
    tpu.vector_store %arg5[%c24_38, %c256_39], %38 {strides = array<i32>} : memref<32x512xf32, #tpu.memory_space<vmem>>, vector<3x256xf32>,
    %c0_40 = arith.constant 0 : index
    %c0_41 = arith.constant 0 : index
    %40 = vector.load %arg5[%c0_40, %c0_41] : memref<32x512xf32, #tpu.memory_space<vmem>>, vector<32x512xf32>
    %41 = arith.truncf %40 : vector<32x512xf32> to vector<32x512xbf16>
    %c0_42 = arith.constant 0 : index
    %c0_43 = arith.constant 0 : index
    %42 = vector.load %arg2[%c0_42, %c0_43] : memref<32x32xbf16, #tpu.memory_space<vmem>>, vector<32x32xbf16>
    %cst_44 = arith.constant dense<0.000000e+00> : vector<32x512xf32>
    %43 = tpu.matmul %42, %41, %cst_44 {dimension_numbers = #tpu.dot_dimension_numbers<[1], [0], [0], [1], [0, 0, 1, 1], [], []>} : vector<32x32xbf16>, vector<32x512xbf16>, vector<32x512xf32> -> vector<32x512xf32>
    %c0_45 = arith.constant 0 : index
    %c0_46 = arith.constant 0 : index
    %44 = vector.load %arg3[%c0_45, %c0_46] : memref<32x1xf32, #tpu.memory_space<vmem>>, vector<32x1xf32>
    %45 = vector.broadcast %44 : vector<32x1xf32> to vector<32x512xf32>
    %46 = arith.addf %43, %45 : vector<32x512xf32>
    %47 = vector.extract_strided_slice %46 {offsets = [0, 0], sizes = [32, 256], strides = [1, 1]} : vector<32x512xf32> to vector<32x256xf32>
    %c0_47 = arith.constant 0 : index
    %c0_48 = arith.constant 0 : index
    %c0_49 = arith.constant 0 : index
    %48 = vector.load %arg4[%c0_47, %c0_48, %c0_49] : memref<2x32x256xf32, #tpu.memory_space<vmem>>, vector<1x32x256xf32>
    %49 = vector.shape_cast %48 : vector<1x32x256xf32> to vector<32x256xf32>
    %50 = vector.shape_cast %47 : vector<32x256xf32> to vector<1x32x256xf32>
    tpu.vector_store %arg4[%c0_47, %c0_48, %c0_49], %50 {strides = array<i32>} : memref<2x32x256xf32, #tpu.memory_space<vmem>>, vector<1x32x256xf32>,
    %51 = vector.extract_strided_slice %46 {offsets = [0, 256], sizes = [32, 256], strides = [1, 1]} : vector<32x512xf32> to vector<32x256xf32>
    %c1_50 = arith.constant 1 : index
    %c0_51 = arith.constant 0 : index
    %c0_52 = arith.constant 0 : index
    %52 = vector.load %arg4[%c1_50, %c0_51, %c0_52] : memref<2x32x256xf32, #tpu.memory_space<vmem>>, vector<1x32x256xf32>
    %53 = vector.shape_cast %52 : vector<1x32x256xf32> to vector<32x256xf32>
    %54 = vector.shape_cast %51 : vector<32x256xf32> to vector<1x32x256xf32>
    tpu.vector_store %arg4[%c1_50, %c0_51, %c0_52], %54 {strides = array<i32>} : memref<2x32x256xf32, #tpu.memory_space<vmem>>, vector<1x32x256xf32>,
    return
  }
  func.func @transform_0(%arg0: i32) -> (i32, i32, i32) {
    %c0_i32 = arith.constant 0 : i32
    %c0_i32_0 = arith.constant 0 : i32
    %c0_i32_1 = arith.constant 0 : i32
    return %arg0, %c0_i32, %c0_i32_0 : i32, i32, i32
  }
  func.func @transform_1(%arg0: i32) -> (i32, i32) {
    %c0_i32 = arith.constant 0 : i32
    %c0_i32_0 = arith.constant 0 : i32
    %c0_i32_1 = arith.constant 0 : i32
    return %c0_i32, %c0_i32_0 : i32, i32
  }
  func.func @transform_2(%arg0: i32) -> (i32, i32) {
    %c0_i32 = arith.constant 0 : i32
    %c0_i32_0 = arith.constant 0 : i32
    %c0_i32_1 = arith.constant 0 : i32
    return %c0_i32, %c0_i32_0 : i32, i32
  }
  func.func @transform_3(%arg0: i32) -> (i32, i32, i32) {
    %c0_i32 = arith.constant 0 : i32
    %c0_i32_0 = arith.constant 0 : i32
    %c0_i32_1 = arith.constant 0 : i32
    return %arg0, %c0_i32, %c0_i32_0 : i32, i32, i32
  }
}

</mosaic_0001>

<llo_original>
// kernel: _conv_forward.1
$region0: #{_conv_forward.1}
  #allocation0 [shape = 'u32[]', space=smem, size = 0x4, offset = 0x4, fixed_abs, tag = 'smem constant byte address 0x4 - core index']
  #allocation1 [shape = 'u32[144,128]{1,0:T(1,128)}', space=vmem, size = 0x12000, scoped, tag = 'internal scratch']
  #allocation2 [shape = 'f32[32,512]{1,0:T(8,128)}', space=vmem, size = 0x10000, scoped, tag = 'scratch operand']
  %s0 = inlined_call_operand.vmem [shape: f32[2,3,256], index: 0, kind: input, shape index: {}]
  %s1 = inlined_call_operand.vmem [shape: bf16[32,32], index: 1, kind: input, shape index: {}]
  %s2 = inlined_call_operand.vmem [shape: f32[32,1], index: 2, kind: input, shape index: {}]
  %s3 = inlined_call_operand.vmem [shape: f32[2,32,256], index: 3, kind: output, shape index: {}]
  %s4 = sld [smem:[#allocation0]]
  $region22: #{_conv_forward.1} parent=0
    _
  %s6 = ssub.s32 1, %s4
  %s7 = scalar_select 0, %s6, %s4
  // Predicated region
  $region2: #{_conv_forward.1} parent=0 // pred_check
    _
  $region3: #{_conv_forward.1} parent=0 // pred_check_branch
    %9 = sbr.rel (0) target = $region5
  $region4: #{_conv_forward.1} parent=0 // pred_region
    _
  $region5: #{_conv_forward.1} parent=0 // pred_fallthru
    _
  // Predicated region
  $region6: #{_conv_forward.1} parent=0 // pred_check
    _
  $region7: #{_conv_forward.1} parent=0 // pred_check_branch
    %11 = sbr.rel (0) target = $region9
  $region8: #{_conv_forward.1} parent=0 // pred_region
    _
  $region9: #{_conv_forward.1} parent=0 // pred_fallthru
    _
  // Predicated region
  $region10: #{_conv_forward.1} parent=0 // pred_check
    _
  $region11: #{_conv_forward.1} parent=0 // pred_check_branch
    %13 = sbr.rel (0) target = $region13
  $region12: #{_conv_forward.1} parent=0 // pred_region
    _
  $region13: #{_conv_forward.1} parent=0 // pred_fallthru
    _
  %15 = vst [vmem:[#allocation2 + $0x60] sm:$0xf8] 0.0
  %16 = vst [vmem:[#allocation2 + $0x68] sm:$0xf8] 0.0
  %17 = vst [vmem:[#allocation2 + $0x70] sm:$0xf8] 0.0
  %18 = vst [vmem:[#allocation2 + $0x78] sm:$0xf8] 0.0
  %v19 = vld [vmem:[%s0] sm:$0x77]
  %v21 = vcombine.high %v19, %v19
  %23 = vst [vmem:[#allocation2] sm:$0x7] %v19
  %24 = vst [vmem:[#allocation2 + $0x8] sm:$0x7] %v21
  %25 = vrot.lane.b32.xlu0 %v19, 127
  %v26 = vpop.permute.xlu0 %25
  %27 = vrot.lane.b32.xlu0 %v21, 127
  %v28 = vpop.permute.xlu0 %27
  %v29 = vlaneseq
  %v30 = vand.u32 %v29, 127
  %vm31 = vcmp.lt.s32.totalorder %v30, 127
  %v32 = vsel %vm31, %v26, %v28
  %v33 = vsel %vm31, %v28, %v26
  %v36 = vrot.slane %v32, 5
  %v37 = vrot.slane %v33, 5
  %40 = vst [vmem:[#allocation2] sm:$0x38] %v36
  %41 = vst [vmem:[#allocation2 + $0x8] sm:$0x38] %v37
  %42 = vrot.lane.b32.xlu0 %v19, 126
  %v43 = vpop.permute.xlu0 %42
  %44 = vrot.lane.b32.xlu0 %v21, 126
  %v45 = vpop.permute.xlu0 %44
  %vm46 = vcmp.lt.s32.totalorder %v30, 126
  %v47 = vsel %vm46, %v43, %v45
  %v48 = vsel %vm46, %v45, %v43
  %v51 = vrot.slane %v47, 2
  %v52 = vrot.slane %v48, 2
  %55 = vst [vmem:[#allocation2] sm:$0xc0] %v51
  %56 = vst [vmem:[#allocation2 + $0x8] sm:$0xc0] %v52
  %57 = vst [vmem:[#allocation2 + $0x20] sm:$0x1] %v51
  %58 = vst [vmem:[#allocation2 + $0x28] sm:$0x1] %v52
  %59 = vrot.lane.b32.xlu0 %v19, 112
  %v60 = vpop.permute.xlu0 %59
  %61 = vrot.lane.b32.xlu0 %v21, 112
  %v62 = vpop.permute.xlu0 %61
  %vm63 = vcmp.lt.s32.totalorder %v30, 112
  %v64 = vsel %vm63, %v60, %v62
  %v65 = vsel %vm63, %v62, %v60
  %v68 = vrot.slane %v64, 7
  %v69 = vrot.slane %v65, 7
  %72 = vst [vmem:[#allocation2 + $0x20] sm:$0xe] %v68
  %73 = vst [vmem:[#allocation2 + $0x28] sm:$0xe] %v69
  %74 = vrot.lane.b32.xlu0 %v19, 111
  %v75 = vpop.permute.xlu0 %74
  %76 = vrot.lane.b32.xlu0 %v21, 111
  %v77 = vpop.permute.xlu0 %76
  %vm78 = vcmp.lt.s32.totalorder %v30, 111
  %v79 = vsel %vm78, %v75, %v77
  %v80 = vsel %vm78, %v77, %v75
  %v83 = vrot.slane %v79, 4
  %v84 = vrot.slane %v80, 4
  %87 = vst [vmem:[#allocation2 + $0x20] sm:$0x70] %v83
  %88 = vst [vmem:[#allocation2 + $0x28] sm:$0x70] %v84
  %89 = vrot.lane.b32.xlu0 %v19, 110
  %v90 = vpop.permute.xlu0 %89
  %91 = vrot.lane.b32.xlu0 %v21, 110
  %v92 = vpop.permute.xlu0 %91
  %vm93 = vcmp.lt.s32.totalorder %v30, 110
  %v94 = vsel %vm93, %v90, %v92
  %v95 = vsel %vm93, %v92, %v90
  %v98 = vrot.slane %v94, 1
  %v99 = vrot.slane %v95, 1
  %102 = vst [vmem:[#allocation2 + $0x20] sm:$0x80] %v98
  %103 = vst [vmem:[#allocation2 + $0x28] sm:$0x80] %v99
  %104 = vst [vmem:[#allocation2 + $0x40] sm:$0x3] %v98
  %105 = vst [vmem:[#allocation2 + $0x48] sm:$0x3] %v99
  %106 = vrot.lane.b32.xlu0 %v19, 96
  %v107 = vpop.permute.xlu0 %106
  %108 = vrot.lane.b32.xlu0 %v21, 96
  %v109 = vpop.permute.xlu0 %108
  %vm110 = vcmp.lt.s32.totalorder %v30, 96
  %v111 = vsel %vm110, %v107, %v109
  %v112 = vsel %vm110, %v109, %v107
  %v115 = vrot.slane %v111, 6
  %v116 = vrot.slane %v112, 6
  %119 = vst [vmem:[#allocation2 + $0x40] sm:$0x1c] %v115
  %120 = vst [vmem:[#allocation2 + $0x48] sm:$0x1c] %v116
  %121 = vrot.lane.b32.xlu0 %v19, 95
  %v122 = vpop.permute.xlu0 %121
  %123 = vrot.lane.b32.xlu0 %v21, 95
  %v124 = vpop.permute.xlu0 %123
  %vm125 = vcmp.lt.s32.totalorder %v30, 95
  %v126 = vsel %vm125, %v122, %v124
  %v127 = vsel %vm125, %v124, %v122
  %v130 = vrot.slane %v126, 3
  %v131 = vrot.slane %v127, 3
  %134 = vst [vmem:[#allocation2 + $0x40] sm:$0xe0] %v130
  %135 = vst [vmem:[#allocation2 + $0x48] sm:$0xe0] %v131
  %136 = vrot.lane.b32.xlu0 %v19, 94
  %v137 = vpop.permute.xlu0 %136
  %138 = vrot.lane.b32.xlu0 %v21, 94
  %v139 = vpop.permute.xlu0 %138
  %vm140 = vcmp.lt.s32.totalorder %v30, 94
  %v141 = vsel %vm140, %v137, %v139
  %v142 = vsel %vm140, %v139, %v137
  %143 = vst [vmem:[#allocation2 + $0x60] sm:$0x7] %v141
  %144 = vst [vmem:[#allocation2 + $0x68] sm:$0x7] %v142
  %s145 = scalar_lea.vmem %s0, 8
  %v146 = vld [vmem:[%s145] sm:$0x77]
  %v148 = vcombine.high %v146, %v146
  %150 = vst [vmem:[#allocation2 + $0x10] sm:$0x7] %v146
  %151 = vst [vmem:[#allocation2 + $0x18] sm:$0x7] %v148
  %152 = vrot.lane.b32.xlu0 %v146, 127
  %v153 = vpop.permute.xlu0 %152
  %154 = vrot.lane.b32.xlu0 %v148, 127
  %v155 = vpop.permute.xlu0 %154
  %v156 = vsel %vm31, %v153, %v155
  %v157 = vsel %vm31, %v155, %v153
  %v160 = vrot.slane %v156, 5
  %v161 = vrot.slane %v157, 5
  %164 = vst [vmem:[#allocation2 + $0x10] sm:$0x38] %v160
  %165 = vst [vmem:[#allocation2 + $0x18] sm:$0x38] %v161
  %166 = vrot.lane.b32.xlu0 %v146, 126
  %v167 = vpop.permute.xlu0 %166
  %168 = vrot.lane.b32.xlu0 %v148, 126
  %v169 = vpop.permute.xlu0 %168
  %v170 = vsel %vm46, %v167, %v169
  %v171 = vsel %vm46, %v169, %v167
  %v174 = vrot.slane %v170, 2
  %v175 = vrot.slane %v171, 2
  %178 = vst [vmem:[#allocation2 + $0x10] sm:$0xc0] %v174
  %179 = vst [vmem:[#allocation2 + $0x18] sm:$0xc0] %v175
  %180 = vst [vmem:[#allocation2 + $0x30] sm:$0x1] %v174
  %181 = vst [vmem:[#allocation2 + $0x38] sm:$0x1] %v175
  %182 = vrot.lane.b32.xlu0 %v146, 112
  %v183 = vpop.permute.xlu0 %182
  %184 = vrot.lane.b32.xlu0 %v148, 112
  %v185 = vpop.permute.xlu0 %184
  %v186 = vsel %vm63, %v183, %v185
  %v187 = vsel %vm63, %v185, %v183
  %v190 = vrot.slane %v186, 7
  %v191 = vrot.slane %v187, 7
  %194 = vst [vmem:[#allocation2 + $0x30] sm:$0xe] %v190
  %195 = vst [vmem:[#allocation2 + $0x38] sm:$0xe] %v191
  %196 = vrot.lane.b32.xlu0 %v146, 111
  %v197 = vpop.permute.xlu0 %196
  %198 = vrot.lane.b32.xlu0 %v148, 111
  %v199 = vpop.permute.xlu0 %198
  %v200 = vsel %vm78, %v197, %v199
  %v201 = vsel %vm78, %v199, %v197
  %v204 = vrot.slane %v200, 4
  %v205 = vrot.slane %v201, 4
  %208 = vst [vmem:[#allocation2 + $0x30] sm:$0x70] %v204
  %209 = vst [vmem:[#allocation2 + $0x38] sm:$0x70] %v205
  %210 = vrot.lane.b32.xlu0 %v146, 110
  %v211 = vpop.permute.xlu0 %210
  %212 = vrot.lane.b32.xlu0 %v148, 110
  %v213 = vpop.permute.xlu0 %212
  %v214 = vsel %vm93, %v211, %v213
  %v215 = vsel %vm93, %v213, %v211
  %v218 = vrot.slane %v214, 1
  %v219 = vrot.slane %v215, 1
  %222 = vst [vmem:[#allocation2 + $0x30] sm:$0x80] %v218
  %223 = vst [vmem:[#allocation2 + $0x38] sm:$0x80] %v219
  %224 = vst [vmem:[#allocation2 + $0x50] sm:$0x3] %v218
  %225 = vst [vmem:[#allocation2 + $0x58] sm:$0x3] %v219
  %226 = vrot.lane.b32.xlu0 %v146, 96
  %v227 = vpop.permute.xlu0 %226
  %228 = vrot.lane.b32.xlu0 %v148, 96
  %v229 = vpop.permute.xlu0 %228
  %v230 = vsel %vm110, %v227, %v229
  %v231 = vsel %vm110, %v229, %v227
  %v234 = vrot.slane %v230, 6
  %v235 = vrot.slane %v231, 6
  %238 = vst [vmem:[#allocation2 + $0x50] sm:$0x1c] %v234
  %239 = vst [vmem:[#allocation2 + $0x58] sm:$0x1c] %v235
  %240 = vrot.lane.b32.xlu0 %v146, 95
  %v241 = vpop.permute.xlu0 %240
  %242 = vrot.lane.b32.xlu0 %v148, 95
  %v243 = vpop.permute.xlu0 %242
  %v244 = vsel %vm125, %v241, %v243
  %v245 = vsel %vm125, %v243, %v241
  %v248 = vrot.slane %v244, 3
  %v249 = vrot.slane %v245, 3
  %252 = vst [vmem:[#allocation2 + $0x50] sm:$0xe0] %v248
  %253 = vst [vmem:[#allocation2 + $0x58] sm:$0xe0] %v249
  %254 = vrot.lane.b32.xlu0 %v146, 94
  %v255 = vpop.permute.xlu0 %254
  %256 = vrot.lane.b32.xlu0 %v148, 94
  %v257 = vpop.permute.xlu0 %256
  %v258 = vsel %vm140, %v255, %v257
  %v259 = vsel %vm140, %v257, %v255
  %260 = vst [vmem:[#allocation2 + $0x70] sm:$0x7] %v258
  %261 = vst [vmem:[#allocation2 + $0x78] sm:$0x7] %v259
  %v262 = vld [vmem:[#allocation2] sm:$0xff]
  %v263 = vld [vmem:[#allocation2 + $0x8] sm:$0xff]
  %v264 = vld [vmem:[#allocation2 + $0x10] sm:$0xff]
  %v265 = vld [vmem:[#allocation2 + $0x18] sm:$0xff]
  %v266 = vld [vmem:[#allocation2 + $0x20] sm:$0xff]
  %v267 = vld [vmem:[#allocation2 + $0x28] sm:$0xff]
  %v268 = vld [vmem:[#allocation2 + $0x30] sm:$0xff]
  %v269 = vld [vmem:[#allocation2 + $0x38] sm:$0xff]
  %v270 = vld [vmem:[#allocation2 + $0x40] sm:$0xff]
  %v271 = vld [vmem:[#allocation2 + $0x48] sm:$0xff]
  %v272 = vld [vmem:[#allocation2 + $0x50] sm:$0xff]
  %v273 = vld [vmem:[#allocation2 + $0x58] sm:$0xff]
  %v274 = vld [vmem:[#allocation2 + $0x60] sm:$0xff]
  %v275 = vld [vmem:[#allocation2 + $0x68] sm:$0xff]
  %v276 = vld [vmem:[#allocation2 + $0x70] sm:$0xff]
  %v277 = vld [vmem:[#allocation2 + $0x78] sm:$0xff]
  %v278 = vpack.c.bf16 %v266, %v262
  %v279 = vpack.c.bf16 %v267, %v263
  %v280 = vpack.c.bf16 %v268, %v264
  %v281 = vpack.c.bf16 %v269, %v265
  %v282 = vpack.c.bf16 %v274, %v270
  %v283 = vpack.c.bf16 %v275, %v271
  %v284 = vpack.c.bf16 %v276, %v272
  %v285 = vpack.c.bf16 %v277, %v273
  %v286 = vld [vmem:[%s1] sm:$0xf]
  %v287 = vld [vmem:[%s1 + $0x4] sm:$0xf]
  %v288 = vld [vmem:[%s1 + $0x8] sm:$0xf]
  %v289 = vld [vmem:[%s1 + $0xc] sm:$0xf]
  %v290 = vld [vmem:[%s2] sm:$0xff]
  %v291 = vld [vmem:[%s2 + $0x8] sm:$0xff]
  %v292 = vld [vmem:[%s2 + $0x10] sm:$0xff]
  %v293 = vld [vmem:[%s2 + $0x18] sm:$0xff]
  %295 = vset.pattern.permute.xlu0 0
  %296 = vperm.xlu0 %295, %v290
  %v297 = vpop.permute.xlu0 %296
  %300 = vset.pattern.permute.xlu0 0
  %301 = vperm.xlu0 %300, %v291
  %v302 = vpop.permute.xlu0 %301
  %305 = vset.pattern.permute.xlu0 0
  %306 = vperm.xlu0 %305, %v292
  %v307 = vpop.permute.xlu0 %306
  %310 = vset.pattern.permute.xlu0 0
  %311 = vperm.xlu0 %310, %v293
  %v312 = vpop.permute.xlu0 %311
  %v318 = vunpack.c.l.b16 %v286
  %v319 = vunpack.c.l.b16 %v287
  %v320 = vunpack.c.l.b16 %v288
  %v321 = vunpack.c.l.b16 %v289
  %v322 = vpack.c.b16 %v319, %v318
  %v323 = vpack.c.b16 %v321, %v320
  %vm324 = vcmask 261120
  %v326 = vsel %vm324, %v322, 0
  %v329 = vsel %vm324, %v323, 0
  %331 = vmatprep.subr.bf16.mxu0 %v279
  %332 = vmatpush1.bf16.msra.mxu0 %v278
  %333 = vmatprep.subr.bf16.mxu0 %v283
  %334 = vmatpush1.bf16.msra.mxu0 %v282
  %335 = vmatprep.subr.bf16.mxu0 0
  %336 = vmatpush1.bf16.msra.mxu0 0
  %337 = vmatprep.subr.bf16.mxu0 0
  %338 = vmatpush1.bf16.msra.mxu0 0
  %339 = vmatprep.subr.bf16.mxu0 0
  %340 = vmatpush1.bf16.msra.mxu0 0
  %341 = vmatprep.subr.bf16.mxu0 0
  %342 = vmatpush1.bf16.msra.mxu0 0
  %343 = vmatprep.subr.bf16.mxu0 0
  %344 = vmatpush1.bf16.msra.mxu0 0
  %345 = vmatprep.subr.bf16.mxu0 0
  %346 = vmatpush1.bf16.msra.mxu0 0
  %347 = vmatprep.subr.bf16.mxu0 0
  %348 = vmatpush1.bf16.msra.mxu0 0
  %349 = vmatprep.subr.bf16.mxu0 0
  %350 = vmatpush1.bf16.msra.mxu0 0
  %351 = vmatprep.subr.bf16.mxu0 0
  %352 = vmatpush1.bf16.msra.mxu0 0
  %353 = vmatprep.subr.bf16.mxu0 0
  %354 = vmatpush1.bf16.msra.mxu0 0
  %355 = vmatprep.subr.bf16.mxu0 0
  %356 = vmatpush1.bf16.msra.mxu0 0
  %357 = vmatprep.subr.bf16.mxu0 0
  %358 = vmatpush1.bf16.msra.mxu0 0
  %359 = vmatprep.subr.bf16.mxu0 0
  %360 = vmatpush1.bf16.msra.mxu0 0
  %361 = vmatprep.subr.bf16.mxu0 0
  %362 = vmatpush1.bf16.msra.mxu0 0
  %363 = vmatprep.mubr.bf16.mxu0 0
  %364 = vmatmul.mubr.bf16.gmra.mrb[0].mxu0 %v326
  %v365 = vpop.f32.mrb[0].mxu0
  %v366 = vadd.f32 %v297, %v365
  %v367 = vpop.f32.mrb[0].mxu0
  %v368 = vadd.f32 %v297, %v367
  %v369 = vpop.f32.mrb[0].mxu0
  %v370 = vadd.f32 %v302, %v369
  %v371 = vpop.f32.mrb[0].mxu0
  %v372 = vadd.f32 %v302, %v371
  %373 = vmatprep.mubr.bf16.mxu0 0
  %374 = vmatmul.mubr.bf16.gmra.mrb[0].mxu0 %v329
  %v375 = vpop.f32.mrb[0].mxu0
  %v376 = vadd.f32 %v307, %v375
  %v377 = vpop.f32.mrb[0].mxu0
  %v378 = vadd.f32 %v307, %v377
  %v379 = vpop.f32.mrb[0].mxu0
  %v380 = vadd.f32 %v312, %v379
  %v381 = vpop.f32.mrb[0].mxu0
  %v382 = vadd.f32 %v312, %v381
  %383 = vdwg.mxu0
  %384 = vmatprep.subr.bf16.mxu0 %v281
  %385 = vmatpush1.bf16.msra.mxu0 %v280
  %386 = vmatprep.subr.bf16.mxu0 %v285
  %387 = vmatpush1.bf16.msra.mxu0 %v284
  %388 = vmatprep.subr.bf16.mxu0 0
  %389 = vmatpush1.bf16.msra.mxu0 0
  %390 = vmatprep.subr.bf16.mxu0 0
  %391 = vmatpush1.bf16.msra.mxu0 0
  %392 = vmatprep.subr.bf16.mxu0 0
  %393 = vmatpush1.bf16.msra.mxu0 0
  %394 = vmatprep.subr.bf16.mxu0 0
  %395 = vmatpush1.bf16.msra.mxu0 0
  %396 = vmatprep.subr.bf16.mxu0 0
  %397 = vmatpush1.bf16.msra.mxu0 0
  %398 = vmatprep.subr.bf16.mxu0 0
  %399 = vmatpush1.bf16.msra.mxu0 0
  %400 = vmatprep.subr.bf16.mxu0 0
  %401 = vmatpush1.bf16.msra.mxu0 0
  %402 = vmatprep.subr.bf16.mxu0 0
  %403 = vmatpush1.bf16.msra.mxu0 0
  %404 = vmatprep.subr.bf16.mxu0 0
  %405 = vmatpush1.bf16.msra.mxu0 0
  %406 = vmatprep.subr.bf16.mxu0 0
  %407 = vmatpush1.bf16.msra.mxu0 0
  %408 = vmatprep.subr.bf16.mxu0 0
  %409 = vmatpush1.bf16.msra.mxu0 0
  %410 = vmatprep.subr.bf16.mxu0 0
  %411 = vmatpush1.bf16.msra.mxu0 0
  %412 = vmatprep.subr.bf16.mxu0 0
  %413 = vmatpush1.bf16.msra.mxu0 0
  %414 = vmatprep.subr.bf16.mxu0 0
  %415 = vmatpush1.bf16.msra.mxu0 0
  %416 = vmatprep.mubr.bf16.mxu0 0
  %417 = vmatmul.mubr.bf16.gmra.mrb[0].mxu0 %v326
  %v418 = vpop.f32.mrb[0].mxu0
  %v419 = vadd.f32 %v297, %v418
  %v420 = vpop.f32.mrb[0].mxu0
  %v421 = vadd.f32 %v297, %v420
  %v422 = vpop.f32.mrb[0].mxu0
  %v423 = vadd.f32 %v302, %v422
  %v424 = vpop.f32.mrb[0].mxu0
  %v425 = vadd.f32 %v302, %v424
  %426 = vmatprep.mubr.bf16.mxu0 0
  %427 = vmatmul.mubr.bf16.gmra.mrb[0].mxu0 %v329
  %v428 = vpop.f32.mrb[0].mxu0
  %v429 = vadd.f32 %v307, %v428
  %v430 = vpop.f32.mrb[0].mxu0
  %v431 = vadd.f32 %v307, %v430
  %v432 = vpop.f32.mrb[0].mxu0
  %v433 = vadd.f32 %v312, %v432
  %v434 = vpop.f32.mrb[0].mxu0
  %v435 = vadd.f32 %v312, %v434
  %436 = vdwg.mxu0
  %437 = vst [vmem:[%s3] sm:$0xff] %v366
  %438 = vst [vmem:[%s3 + $0x8] sm:$0xff] %v368
  %439 = vst [vmem:[%s3 + $0x10] sm:$0xff] %v370
  %440 = vst [vmem:[%s3 + $0x18] sm:$0xff] %v372
  %441 = vst [vmem:[%s3 + $0x20] sm:$0xff] %v376
  %442 = vst [vmem:[%s3 + $0x28] sm:$0xff] %v378
  %443 = vst [vmem:[%s3 + $0x30] sm:$0xff] %v380
  %444 = vst [vmem:[%s3 + $0x38] sm:$0xff] %v382
  %s445 = scalar_lea.vmem %s3, 64
  %446 = vst [vmem:[%s445] sm:$0xff] %v419
  %447 = vst [vmem:[%s445 + $0x8] sm:$0xff] %v421
  %448 = vst [vmem:[%s445 + $0x10] sm:$0xff] %v423
  %449 = vst [vmem:[%s445 + $0x18] sm:$0xff] %v425
  %450 = vst [vmem:[%s445 + $0x20] sm:$0xff] %v429
  %451 = vst [vmem:[%s445 + $0x28] sm:$0xff] %v431
  %452 = vst [vmem:[%s445 + $0x30] sm:$0xff] %v433
  %453 = vst [vmem:[%s445 + $0x38] sm:$0xff] %v435
  // Predicated region
  $region14: #{_conv_forward.1} parent=0 // pred_check
    _
  $region15: #{_conv_forward.1} parent=0 // pred_check_branch
    %455 = sbr.rel (0) target = $region17
  $region16: #{_conv_forward.1} parent=0 // pred_region
    _
  $region17: #{_conv_forward.1} parent=0 // pred_fallthru
    _
  // Predicated region
  $region18: #{_conv_forward.1} parent=0 // pred_check
    _
  $region19: #{_conv_forward.1} parent=0 // pred_check_branch
    %457 = sbr.rel (0) target = $region21
  $region20: #{_conv_forward.1} parent=0 // pred_region
    _
  $region21: #{_conv_forward.1} parent=0 // pred_fallthru
    _

</llo_original>
